<compile_context>
chip_gen: v7x
topology: tpu7x:2x2x1
jax: 0.10.0
libtpu: 0.0.40
codegen_flags: <defaults>
</compile_context>

<pallas_src>
import math

import jax
import jax.numpy as jnp
import numpy as np
from jax.experimental import pallas as pl
from jax.experimental.pallas import tpu as pltpu


# --------------------------------------------------------------------------
# Kernel 1: Q/K/V projections (bf16 operands, f32 accumulation, bf16 outputs).
# --------------------------------------------------------------------------
def _proj_kernel(xq_ref, xk_ref, xv_ref,
                 wq_ref, wk_ref, wv_ref,
                 qb_ref, kb_ref, vb_ref,
                 q_out, k_out, v_out):
    f32 = jnp.float32
    q = jnp.dot(xq_ref[...], wq_ref[...], preferred_element_type=f32) + qb_ref[...]
    k = jnp.dot(xk_ref[...], wk_ref[...], preferred_element_type=f32) + kb_ref[...]
    v = jnp.dot(xv_ref[...], wv_ref[...], preferred_element_type=f32) + vb_ref[...]
    q_out[...] = q.astype(q_out.dtype)
    k_out[...] = k.astype(k_out.dtype)
    v_out[...] = v.astype(v_out.dtype)


# --------------------------------------------------------------------------
# Kernel 2: batched-head attention + final Linear (lane-dense padded output).
# --------------------------------------------------------------------------
def _attn_kernel(q_ref, k_ref, v_ref, wlin_ref, blin_ref, out_ref):
    f32 = jnp.float32
    bf16 = jnp.bfloat16

    q = q_ref[...]          # (heads, TN, dh)  bf16, scale already folded in
    k = k_ref[...]          # (heads, N,  dh)  bf16
    v = v_ref[...]          # (heads, N,  dh)  bf16
    heads = q.shape[0]

    # Batched QK^T over heads; f32 accumulation.  Scale is pre-folded into Q.
    s = jnp.einsum('hqd,hkd->hqk', q, k, preferred_element_type=f32)  # (h,TN,N)

    # Numerically stable softmax numerator in f32; normalize AFTER PV.
    s = s - jnp.max(s, axis=-1, keepdims=True)
    p = jnp.exp(s)
    denom = jnp.sum(p, axis=-1, keepdims=True)                        # (h,TN,1)

    pv = jnp.einsum('hqk,hkd->hqd', p.astype(bf16), v,
                    preferred_element_type=f32)                       # (h,TN,dh)
    ah = pv * pl.reciprocal(denom, approx=True)                       # (h,TN,dh)

    # Final Linear: accumulate per-head row blocks of W_lin (equivalent to
    # concat over heads followed by one matmul); bias folded into the store.
    wlin = wlin_ref[...]                                              # (h,dh,hp)
    out = blin_ref[...]                                               # (1,hp)
    for h in range(heads):                                            # static unroll
        out = out + jnp.dot(ah[h].astype(bf16), wlin[h],
                            preferred_element_type=f32)
    out_ref[...] = out.astype(out_ref.dtype)


# --------------------------------------------------------------------------
# Host wrapper.
# --------------------------------------------------------------------------
def attention_layer_pallas(input_x, pe_Q, pe_K, params, *,
                           hid_dim, heads, row_block=None):
    N, in_dim = input_x.shape
    pe_dim = pe_Q.shape[-1]
    DQ = in_dim + pe_dim
    assert hid_dim % heads == 0
    dh = hid_dim // heads
    scale = 1.0 / math.sqrt(hid_dim)          # matches the PyTorch reference
    bf16, f32 = jnp.bfloat16, jnp.float32

    # ---- weight prep: head collapse, scale fold, bf16 cast ------------------
    def collapse(w):                           # (heads, D, dh) -> (D, heads*dh)
        return jnp.transpose(w, (1, 0, 2)).reshape(w.shape[1], heads * dh)

    wq = (collapse(params["WQ"]) * scale).astype(bf16)      # scale folded in
    wk = collapse(params["WK"]).astype(bf16)
    wv = collapse(params["WV"]).astype(bf16)
    qb = (params["Q_bias"].reshape(1, hid_dim) * scale).astype(f32)
    kb = params["K_bias"].reshape(1, hid_dim).astype(f32)
    vb = params["V_bias"].reshape(1, hid_dim).astype(f32)

    # Final Linear: (out,in) -> (in,out), pad output columns to a multiple of
    # 128 for lane-dense stores, split into per-head (dh, hid_pad) row blocks.
    hid_pad = ((hid_dim + 127) // 128) * 128
    w_lin = params["lin_weight"].T                                   # (hid, hid)
    w_lin_pad = jnp.zeros((hid_dim, hid_pad), f32).at[:, :hid_dim].set(w_lin)
    wlin3 = w_lin_pad.reshape(heads, dh, hid_pad).astype(bf16)       # (h,dh,hp)
    blin = jnp.zeros((1, hid_pad), f32).at[:, :hid_dim].set(params["lin_bias"])

    # ---- input prep: host concat of [x, pe] (one DQ-deep matmul), bf16 ------
    xq_cat = jnp.concatenate([input_x, pe_Q], axis=-1).astype(bf16)  # (N, DQ)
    xk_cat = jnp.concatenate([input_x, pe_K], axis=-1).astype(bf16)  # (N, DQ)
    xv = input_x.astype(bf16)                                        # (N, in_dim)

    # ---- row tiling: pad rows to a multiple of the tile (no giant fallback) -
    if row_block is None:
        row_block = 256
    tn = max(16, (int(row_block) // 16) * 16)          # bf16 sublane packing
    tn = min(tn, ((N + 15) // 16) * 16)
    Np = ((N + tn - 1) // tn) * tn
    num_tiles = Np // tn

    def pad_rows(a):
        return a if a.shape[0] == Np else jnp.pad(a, ((0, Np - a.shape[0]), (0, 0)))

    xq_cat, xk_cat, xv = pad_rows(xq_cat), pad_rows(xk_cat), pad_rows(xv)

    # ---- VMEM budget derived from actual buffer sizes (cap valid on v7x) ----
    est = (2 * (2 * tn * DQ * 2 + tn * in_dim * 2          # x tiles (dbl-buf)
                + 2 * DQ * hid_dim * 2 + in_dim * hid_dim * 2
                + 3 * hid_dim * 4 + 3 * tn * hid_dim * 2
                + heads * tn * dh * 2 + 2 * heads * N * dh * 2
                + heads * dh * hid_pad * 2 + hid_pad * 4 + tn * hid_pad * 4)
           + 3 * heads * tn * N * 4)                        # live score buffers
    vmem_limit = int(min(64 << 20, max(32 << 20, 2 * est)))
    cparams = pltpu.CompilerParams(dimension_semantics=("parallel",),
                                   vmem_limit_bytes=vmem_limit)

    tiled = lambda i: (i, 0)
    whole = lambda i: (0, 0)

    # ---- call 1: projections (Q/K/V computed exactly once per node) ---------
    q2, k2, v2 = pl.pallas_call(
        _proj_kernel,
        out_shape=(jax.ShapeDtypeStruct((Np, hid_dim), bf16),
                   jax.ShapeDtypeStruct((Np, hid_dim), bf16),
                   jax.ShapeDtypeStruct((Np, hid_dim), bf16)),
        grid_spec=pltpu.PrefetchScalarGridSpec(
            num_scalar_prefetch=0,
            grid=(num_tiles,),
            in_specs=[
                pl.BlockSpec((tn, DQ), tiled),            # [x, pe_Q]
                pl.BlockSpec((tn, DQ), tiled),            # [x, pe_K]
                pl.BlockSpec((tn, in_dim), tiled),        # x (for V)
                pl.BlockSpec((DQ, hid_dim), whole),       # WQ (scale folded)
                pl.BlockSpec((DQ, hid_dim), whole),       # WK
                pl.BlockSpec((in_dim, hid_dim), whole),   # WV
                pl.BlockSpec((1, hid_dim), whole),        # Q_bias (scaled)
                pl.BlockSpec((1, hid_dim), whole),        # K_bias
                pl.BlockSpec((1, hid_dim), whole),        # V_bias
            ],
            out_specs=[pl.BlockSpec((tn, hid_dim), tiled)] * 3,
        ),
        compiler_params=cparams,
    )(xq_cat, xk_cat, xv, wq, wk, wv, qb, kb, vb)

    # Layout plumbing (plain XLA): (rows, heads*dh) -> (heads, rows, dh).
    def to_heads(a, rows):
        return jnp.transpose(a.reshape(rows, heads, dh), (1, 0, 2))

    q3 = to_heads(q2, Np)          # (heads, Np, dh)  queries (padded rows ok)
    k3 = to_heads(k2[:N], N)       # (heads, N,  dh)  keys: real nodes only
    v3 = to_heads(v2[:N], N)       # (heads, N,  dh)

    # ---- call 2: batched-head attention + final Linear ----------------------
    def tiled3(i):
        return (0, i, 0)

    def whole3(i):
        return (0, 0, 0)

    out_pad = pl.pallas_call(
        _attn_kernel,
        out_shape=jax.ShapeDtypeStruct((Np, hid_pad), f32),
        grid_spec=pltpu.PrefetchScalarGridSpec(
            num_scalar_prefetch=0,
            grid=(num_tiles,),
            in_specs=[
                pl.BlockSpec((heads, tn, dh), tiled3),       # Q row tile
                pl.BlockSpec((heads, N, dh), whole3),        # K (full node set)
                pl.BlockSpec((heads, N, dh), whole3),        # V
                pl.BlockSpec((heads, dh, hid_pad), whole3),  # W_lin per-head
                pl.BlockSpec((1, hid_pad), whole),           # lin bias (padded)
            ],
            out_specs=pl.BlockSpec((tn, hid_pad), tiled),
        ),
        compiler_params=cparams,
    )(q3, k3, v3, wlin3, blin)

    return out_pad[:N, :hid_dim]


# --------------------------------------------------------------------------
# Pure-JAX f32 reference mirroring the PyTorch module.
# --------------------------------------------------------------------------
def reference_forward(input_x, pe_Q, pe_K, params, *, hid_dim, heads):
    x_Q = jnp.concatenate([input_x, pe_Q], axis=-1)
    x_K = jnp.concatenate([input_x, pe_K], axis=-1)
    Q = jnp.einsum('nd,hdk->hnk', x_Q, params["WQ"]) + params["Q_bias"]
    K = jnp.einsum('nd,hdk->hnk', x_K, params["WK"]) + params["K_bias"]
    V = jnp.einsum('nd,hdk->hnk', input_x, params["WV"]) + params["V_bias"]
    S = jnp.einsum('hnk,hmk->hnm', Q, K) / math.sqrt(hid_dim)
    A = jax.nn.softmax(S, axis=-1)
    AX = jnp.einsum('hnm,hmk->hnk', A, V)                     # (heads, N, dh)
    N = input_x.shape[0]
    x_cat = jnp.transpose(AX, (1, 0, 2)).reshape(N, hid_dim)  # cat over heads
    return x_cat @ params["lin_weight"].T + params["lin_bias"]


def glorot_uniform(key, shape):
    fan_in, fan_out = shape[-2], shape[-1]
    limit = math.sqrt(6.0 / (fan_in + fan_out))
    return jax.random.uniform(key, shape, jnp.float32, -limit, limit)


if __name__ == "__main__":
    # Small, self-consistent shapes.
    N = 64                  # number of nodes
    in_dim = 32
    hid_dim = 32
    heads = 2
    num_edge_types = 3
    dh = hid_dim // heads
    DQ = (num_edge_types + 1) * hid_dim       # 128
    pe_dim = DQ - in_dim                      # 96

    key = jax.random.PRNGKey(0)
    ks = jax.random.split(key, 8)

    params = {
        "WQ": glorot_uniform(ks[0], (heads, DQ, dh)),
        "WK": glorot_uniform(ks[1], (heads, DQ, dh)),
        "WV": glorot_uniform(ks[2], (heads, in_dim, dh)),
        "Q_bias": jnp.zeros((heads, 1, dh), jnp.float32),
        "K_bias": jnp.zeros((heads, 1, dh), jnp.float32),
        "V_bias": jnp.zeros((heads, 1, dh), jnp.float32),
        "lin_weight": glorot_uniform(ks[3], (hid_dim, hid_dim)),   # (out, in)
        "lin_bias": jax.random.uniform(ks[4], (hid_dim,), jnp.float32, -0.1, 0.1),
    }

    input_x = jax.random.normal(ks[5], (N, in_dim), jnp.float32)
    pe_Q = jax.random.normal(ks[6], (N, pe_dim), jnp.float32)
    pe_K = jax.random.normal(ks[7], (N, pe_dim), jnp.float32)

    out = attention_layer_pallas(input_x, pe_Q, pe_K, params,
                                 hid_dim=hid_dim, heads=heads, row_block=32)
    out = jax.block_until_ready(out)

    ref = reference_forward(input_x, pe_Q, pe_K, params,
                            hid_dim=hid_dim, heads=heads)

    # bf16 operands (f32 accumulation) on all matmuls + approx reciprocal
    # => compare against the f32 reference at a relaxed tolerance.
    np.testing.assert_allclose(np.asarray(out), np.asarray(ref),
                               rtol=3e-2, atol=3e-2)

    print("KERNEL_OK")
</pallas_src>

<mosaic_0001>
module attributes {stable_mosaic.version = 11 : i64} {
  func.func @_proj_kernel(%arg0: i32, %arg1: memref<32x128xbf16, #tpu.memory_space<vmem>>, %arg2: memref<32x128xbf16, #tpu.memory_space<vmem>>, %arg3: memref<32x32xbf16, #tpu.memory_space<vmem>>, %arg4: memref<128x32xbf16, #tpu.memory_space<vmem>>, %arg5: memref<128x32xbf16, #tpu.memory_space<vmem>>, %arg6: memref<32x32xbf16, #tpu.memory_space<vmem>>, %arg7: memref<1x32xf32, #tpu.memory_space<vmem>>, %arg8: memref<1x32xf32, #tpu.memory_space<vmem>>, %arg9: memref<1x32xf32, #tpu.memory_space<vmem>>, %arg10: memref<32x32xbf16, #tpu.memory_space<vmem>>, %arg11: memref<32x32xbf16, #tpu.memory_space<vmem>>, %arg12: memref<32x32xbf16, #tpu.memory_space<vmem>>) attributes {dimension_semantics = [#tpu.dimension_semantics<parallel>], iteration_bounds = array<i64: 2>, scalar_prefetch = 0 : i64, scratch_operands = 0 : i64, tpu.core_type = #tpu.core_type<tc>, window_params = [{transform_indices = @transform_0, window_bounds = array<i64: 32, 128>}, {transform_indices = @transform_1, window_bounds = array<i64: 32, 128>}, {transform_indices = @transform_2, window_bounds = array<i64: 32, 32>}, {pipeline_mode = #tpu.pipeline_mode<synchronous>, transform_indices = @transform_3, window_bounds = array<i64: 128, 32>}, {pipeline_mode = #tpu.pipeline_mode<synchronous>, transform_indices = @transform_4, window_bounds = array<i64: 128, 32>}, {pipeline_mode = #tpu.pipeline_mode<synchronous>, transform_indices = @transform_5, window_bounds = array<i64: 32, 32>}, {pipeline_mode = #tpu.pipeline_mode<synchronous>, transform_indices = @transform_6, window_bounds = array<i64: 1, 32>}, {pipeline_mode = #tpu.pipeline_mode<synchronous>, transform_indices = @transform_7, window_bounds = array<i64: 1, 32>}, {pipeline_mode = #tpu.pipeline_mode<synchronous>, transform_indices = @transform_8, window_bounds = array<i64: 1, 32>}, {transform_indices = @transform_9, window_bounds = array<i64: 32, 32>}, {transform_indices = @transform_10, window_bounds = array<i64: 32, 32>}, {transform_indices = @transform_11, window_bounds = array<i64: 32, 32>}]} {
    %c0 = arith.constant 0 : index
    %c0_0 = arith.constant 0 : index
    %0 = vector.load %arg1[%c0, %c0_0] : memref<32x128xbf16, #tpu.memory_space<vmem>>, vector<32x128xbf16>
    %c0_1 = arith.constant 0 : index
    %c0_2 = arith.constant 0 : index
    %1 = vector.load %arg4[%c0_1, %c0_2] : memref<128x32xbf16, #tpu.memory_space<vmem>>, vector<128x32xbf16>
    %cst = arith.constant dense<0.000000e+00> : vector<32x32xf32>
    %2 = tpu.matmul %0, %1, %cst {dimension_numbers = #tpu.dot_dimension_numbers<[1], [0], [0], [1], [0, 0, 1, 1], [], []>} : vector<32x128xbf16>, vector<128x32xbf16>, vector<32x32xf32> -> vector<32x32xf32>
    %c0_3 = arith.constant 0 : index
    %c0_4 = arith.constant 0 : index
    %3 = vector.load %arg7[%c0_3, %c0_4] : memref<1x32xf32, #tpu.memory_space<vmem>>, vector<1x32xf32>
    %4 = vector.broadcast %3 : vector<1x32xf32> to vector<32x32xf32>
    %5 = arith.addf %2, %4 : vector<32x32xf32>
    %c0_5 = arith.constant 0 : index
    %c0_6 = arith.constant 0 : index
    %6 = vector.load %arg2[%c0_5, %c0_6] : memref<32x128xbf16, #tpu.memory_space<vmem>>, vector<32x128xbf16>
    %c0_7 = arith.constant 0 : index
    %c0_8 = arith.constant 0 : index
    %7 = vector.load %arg5[%c0_7, %c0_8] : memref<128x32xbf16, #tpu.memory_space<vmem>>, vector<128x32xbf16>
    %cst_9 = arith.constant dense<0.000000e+00> : vector<32x32xf32>
    %8 = tpu.matmul %6, %7, %cst_9 {dimension_numbers = #tpu.dot_dimension_numbers<[1], [0], [0], [1], [0, 0, 1, 1], [], []>} : vector<32x128xbf16>, vector<128x32xbf16>, vector<32x32xf32> -> vector<32x32xf32>
    %c0_10 = arith.constant 0 : index
    %c0_11 = arith.constant 0 : index
    %9 = vector.load %arg8[%c0_10, %c0_11] : memref<1x32xf32, #tpu.memory_space<vmem>>, vector<1x32xf32>
    %10 = vector.broadcast %9 : vector<1x32xf32> to vector<32x32xf32>
    %11 = arith.addf %8, %10 : vector<32x32xf32>
    %c0_12 = arith.constant 0 : index
    %c0_13 = arith.constant 0 : index
    %12 = vector.load %arg3[%c0_12, %c0_13] : memref<32x32xbf16, #tpu.memory_space<vmem>>, vector<32x32xbf16>
    %c0_14 = arith.constant 0 : index
    %c0_15 = arith.constant 0 : index
    %13 = vector.load %arg6[%c0_14, %c0_15] : memref<32x32xbf16, #tpu.memory_space<vmem>>, vector<32x32xbf16>
    %cst_16 = arith.constant dense<0.000000e+00> : vector<32x32xf32>
    %14 = tpu.matmul %12, %13, %cst_16 {dimension_numbers = #tpu.dot_dimension_numbers<[1], [0], [0], [1], [0, 0, 1, 1], [], []>} : vector<32x32xbf16>, vector<32x32xbf16>, vector<32x32xf32> -> vector<32x32xf32>
    %c0_17 = arith.constant 0 : index
    %c0_18 = arith.constant 0 : index
    %15 = vector.load %arg9[%c0_17, %c0_18] : memref<1x32xf32, #tpu.memory_space<vmem>>, vector<1x32xf32>
    %16 = vector.broadcast %15 : vector<1x32xf32> to vector<32x32xf32>
    %17 = arith.addf %14, %16 : vector<32x32xf32>
    %18 = arith.truncf %5 : vector<32x32xf32> to vector<32x32xbf16>
    %c0_19 = arith.constant 0 : index
    %c0_20 = arith.constant 0 : index
    %19 = vector.load %arg10[%c0_19, %c0_20] : memref<32x32xbf16, #tpu.memory_space<vmem>>, vector<32x32xbf16>
    tpu.vector_store %arg10[%c0_19, %c0_20], %18 {strides = array<i32>} : memref<32x32xbf16, #tpu.memory_space<vmem>>, vector<32x32xbf16>,
    %20 = arith.truncf %11 : vector<32x32xf32> to vector<32x32xbf16>
    %c0_21 = arith.constant 0 : index
    %c0_22 = arith.constant 0 : index
    %21 = vector.load %arg11[%c0_21, %c0_22] : memref<32x32xbf16, #tpu.memory_space<vmem>>, vector<32x32xbf16>
    tpu.vector_store %arg11[%c0_21, %c0_22], %20 {strides = array<i32>} : memref<32x32xbf16, #tpu.memory_space<vmem>>, vector<32x32xbf16>,
    %22 = arith.truncf %17 : vector<32x32xf32> to vector<32x32xbf16>
    %c0_23 = arith.constant 0 : index
    %c0_24 = arith.constant 0 : index
    %23 = vector.load %arg12[%c0_23, %c0_24] : memref<32x32xbf16, #tpu.memory_space<vmem>>, vector<32x32xbf16>
    tpu.vector_store %arg12[%c0_23, %c0_24], %22 {strides = array<i32>} : memref<32x32xbf16, #tpu.memory_space<vmem>>, vector<32x32xbf16>,
    return
  }
  func.func @transform_0(%arg0: i32) -> (i32, i32) {
    %c0_i32 = arith.constant 0 : i32
    %c0_i32_0 = arith.constant 0 : i32
    return %arg0, %c0_i32 : i32, i32
  }
  func.func @transform_1(%arg0: i32) -> (i32, i32) {
    %c0_i32 = arith.constant 0 : i32
    %c0_i32_0 = arith.constant 0 : i32
    return %arg0, %c0_i32 : i32, i32
  }
  func.func @transform_2(%arg0: i32) -> (i32, i32) {
    %c0_i32 = arith.constant 0 : i32
    %c0_i32_0 = arith.constant 0 : i32
    return %arg0, %c0_i32 : i32, i32
  }
  func.func @transform_3(%arg0: i32) -> (i32, i32) {
    %c0_i32 = arith.constant 0 : i32
    %c0_i32_0 = arith.constant 0 : i32
    %c0_i32_1 = arith.constant 0 : i32
    return %c0_i32, %c0_i32_0 : i32, i32
  }
  func.func @transform_4(%arg0: i32) -> (i32, i32) {
    %c0_i32 = arith.constant 0 : i32
    %c0_i32_0 = arith.constant 0 : i32
    %c0_i32_1 = arith.constant 0 : i32
    return %c0_i32, %c0_i32_0 : i32, i32
  }
  func.func @transform_5(%arg0: i32) -> (i32, i32) {
    %c0_i32 = arith.constant 0 : i32
    %c0_i32_0 = arith.constant 0 : i32
    %c0_i32_1 = arith.constant 0 : i32
    return %c0_i32, %c0_i32_0 : i32, i32
  }
  func.func @transform_6(%arg0: i32) -> (i32, i32) {
    %c0_i32 = arith.constant 0 : i32
    %c0_i32_0 = arith.constant 0 : i32
    %c0_i32_1 = arith.constant 0 : i32
    return %c0_i32, %c0_i32_0 : i32, i32
  }
  func.func @transform_7(%arg0: i32) -> (i32, i32) {
    %c0_i32 = arith.constant 0 : i32
    %c0_i32_0 = arith.constant 0 : i32
    %c0_i32_1 = arith.constant 0 : i32
    return %c0_i32, %c0_i32_0 : i32, i32
  }
  func.func @transform_8(%arg0: i32) -> (i32, i32) {
    %c0_i32 = arith.constant 0 : i32
    %c0_i32_0 = arith.constant 0 : i32
    %c0_i32_1 = arith.constant 0 : i32
    return %c0_i32, %c0_i32_0 : i32, i32
  }
  func.func @transform_9(%arg0: i32) -> (i32, i32) {
    %c0_i32 = arith.constant 0 : i32
    %c0_i32_0 = arith.constant 0 : i32
    return %arg0, %c0_i32 : i32, i32
  }
  func.func @transform_10(%arg0: i32) -> (i32, i32) {
    %c0_i32 = arith.constant 0 : i32
    %c0_i32_0 = arith.constant 0 : i32
    return %arg0, %c0_i32 : i32, i32
  }
  func.func @transform_11(%arg0: i32) -> (i32, i32) {
    %c0_i32 = arith.constant 0 : i32
    %c0_i32_0 = arith.constant 0 : i32
    return %arg0, %c0_i32 : i32, i32
  }
}

</mosaic_0001>

<llo_original>
// kernel: tpu_custom_call.1
$region0: #{tpu_custom_call.1}
  #allocation0 [shape = 'u32[]', space=smem, size = 0x4, offset = 0x4, fixed_abs, tag = 'smem constant byte address 0x4 - core index']
  #allocation1 [shape = 'u32[144,128]{1,0:T(1,128)}', space=vmem, size = 0x12000, scoped, tag = 'internal scratch']
  %s0 = inlined_call_operand.vmem [shape: bf16[64,128], index: 0, kind: input, shape index: {}]
  %s1 = inlined_call_operand.vmem [shape: bf16[64,128], index: 1, kind: input, shape index: {}]
  %s2 = inlined_call_operand.vmem [shape: bf16[64,32], index: 2, kind: input, shape index: {}]
  %s3 = inlined_call_operand.vmem [shape: bf16[128,32], index: 3, kind: input, shape index: {}]
  %s4 = inlined_call_operand.vmem [shape: bf16[128,32], index: 4, kind: input, shape index: {}]
  %s5 = inlined_call_operand.vmem [shape: bf16[32,32], index: 5, kind: input, shape index: {}]
  %s6 = inlined_call_operand.vmem [shape: f32[1,32], index: 6, kind: input, shape index: {}]
  %s7 = inlined_call_operand.vmem [shape: f32[1,32], index: 7, kind: input, shape index: {}]
  %s8 = inlined_call_operand.vmem [shape: f32[1,32], index: 8, kind: input, shape index: {}]
  %s9 = inlined_call_operand.vmem [shape: bf16[64,32], index: 9, kind: output, shape index: {0}]
  %s10 = inlined_call_operand.vmem [shape: bf16[64,32], index: 10, kind: output, shape index: {1}]
  %s11 = inlined_call_operand.vmem [shape: bf16[64,32], index: 11, kind: output, shape index: {2}]
  %12 = xla_tuple %s9, %s10, %s11
  %s13 = sld [smem:[#allocation0]]
  $region85: #{tpu_custom_call.1} parent=0
    _
  %s15 = ssub.s32 1, %s13
  %s16 = scalar_select 0, %s15, %s13
  loop: start=0, step=1, limit=4
  $region2: #{tpu_custom_call.1} parent=0 // loop_pre_header
    _
  $region3: #{tpu_custom_call.1} parent=0 // loop_header
    %s18 = sphi 0, %s22
    %p19 = scmp.ge.s32.totalorder %s18, 4
    %s28 = sphi 0, %s30
    %s31 = sphi 0, %s28
    %s32 = sphi 0, %s31
    %s48 = sphi 0, %s32
    %s54 = sphi 0, %s56
    %s57 = sphi 0, %s54
    %s58 = sphi 0, %s57
    %s74 = sphi 0, %s58
    %s80 = sphi 0, %s82
    %s83 = sphi 0, %s80
    %s84 = sphi 0, %s83
    %s100 = sphi 0, %s84
    %s104 = sphi 0, %s104
    %s106 = sphi 0, %s104
    %s107 = sphi 0, %s106
    %s121 = sphi 0, %s107
    %s125 = sphi 0, %s125
    %s127 = sphi 0, %s125
    %s128 = sphi 0, %s127
    %s142 = sphi 0, %s128
    %s146 = sphi 0, %s146
    %s148 = sphi 0, %s146
    %s149 = sphi 0, %s148
    %s163 = sphi 0, %s149
    %s167 = sphi 0, %s167
    %s169 = sphi 0, %s167
    %s170 = sphi 0, %s169
    %s184 = sphi 0, %s170
    %s188 = sphi 0, %s188
    %s190 = sphi 0, %s188
    %s191 = sphi 0, %s190
    %s205 = sphi 0, %s191
    %s209 = sphi 0, %s209
    %s211 = sphi 0, %s209
    %s212 = sphi 0, %s211
    %s226 = sphi 0, %s212
    %s232 = sphi 0, %s234
    %s235 = sphi 0, %s232
    %s236 = sphi 0, %s235
    %s252 = sphi 0, %s236
    %s258 = sphi 0, %s260
    %s261 = sphi 0, %s258
    %s262 = sphi 0, %s261
    %s278 = sphi 0, %s262
    %s284 = sphi 0, %s286
    %s287 = sphi 0, %s284
    %s288 = sphi 0, %s287
    %s304 = sphi 0, %s288
  $region4: #{tpu_custom_call.1} parent=0 // loop_header_branch
    %21 = sbr.rel (%p19) target = $region8
  $region5: #{tpu_custom_call.1} parent=0 // loop_body
    %s23 = ssub.s32 %s18, 1
    %s24 = ssub.s32 %s18, 2
    %s25 = sadd.s32 %s18, 1
    %s26 = ssub.s32 %s18, %s25
    %p27 = scmp.eq.s32.totalorder %s26, 0
    %s29 = sadd.s32 %s28, 1
    %s30 = scalar_select %p27, %s28, %s29
    %p33 = pneg %p27
    %p34 = scmp.eq.s32.totalorder %s18, 1
    %p35 = por %p33, %p34
    %p36 = scmp.ne.s32.totalorder %s28, %s31
    %p37 = scmp.eq.s32.totalorder %s18, 0
    %p38 = por %p36, %p37
    %p39 = scmp.ne.s32.totalorder %s28, %s31
    %p40 = scmp.eq.s32.totalorder %s23, 1
    %p41 = por %p39, %p40
    %p42 = scmp.ne.s32.totalorder %s31, %s32
    %p43 = scmp.eq.s32.totalorder %s23, 0
    %p44 = por %p42, %p43
    %p45 = scmp.ne.s32.totalorder %s31, %s32
    %p46 = scmp.eq.s32.totalorder %s24, 1
    %p47 = por %p45, %p46
    %p49 = scmp.ne.s32.totalorder %s32, %s48
    %p50 = scmp.eq.s32.totalorder %s24, 0
    %p51 = por %p49, %p50
    %s52 = ssub.s32 %s18, %s25
    %p53 = scmp.eq.s32.totalorder %s52, 0
    %s55 = sadd.s32 %s54, 1
    %s56 = scalar_select %p53, %s54, %s55
    %p59 = pneg %p53
    %p60 = scmp.eq.s32.totalorder %s18, 1
    %p61 = por %p59, %p60
    %p62 = scmp.ne.s32.totalorder %s54, %s57
    %p63 = scmp.eq.s32.totalorder %s18, 0
    %p64 = por %p62, %p63
    %p65 = scmp.ne.s32.totalorder %s54, %s57
    %p66 = scmp.eq.s32.totalorder %s23, 1
    %p67 = por %p65, %p66
    %p68 = scmp.ne.s32.totalorder %s57, %s58
    %p69 = scmp.eq.s32.totalorder %s23, 0
    %p70 = por %p68, %p69
    %p71 = scmp.ne.s32.totalorder %s57, %s58
    %p72 = scmp.eq.s32.totalorder %s24, 1
    %p73 = por %p71, %p72
    %p75 = scmp.ne.s32.totalorder %s58, %s74
    %p76 = scmp.eq.s32.totalorder %s24, 0
    %p77 = por %p75, %p76
    %s78 = ssub.s32 %s18, %s25
    %p79 = scmp.eq.s32.totalorder %s78, 0
    %s81 = sadd.s32 %s80, 1
    %s82 = scalar_select %p79, %s80, %s81
    %p85 = pneg %p79
    %p86 = scmp.eq.s32.totalorder %s18, 1
    %p87 = por %p85, %p86
    %p88 = scmp.ne.s32.totalorder %s80, %s83
    %p89 = scmp.eq.s32.totalorder %s18, 0
    %p90 = por %p88, %p89
    %p91 = scmp.ne.s32.totalorder %s80, %s83
    %p92 = scmp.eq.s32.totalorder %s23, 1
    %p93 = por %p91, %p92
    %p94 = scmp.ne.s32.totalorder %s83, %s84
    %p95 = scmp.eq.s32.totalorder %s23, 0
    %p96 = por %p94, %p95
    %p97 = scmp.ne.s32.totalorder %s83, %s84
    %p98 = scmp.eq.s32.totalorder %s24, 1
    %p99 = por %p97, %p98
    %p101 = scmp.ne.s32.totalorder %s84, %s100
    %p102 = scmp.eq.s32.totalorder %s24, 0
    %p103 = por %p101, %p102
    %s105 = sadd.s32 %s104, 1
    %p108 = scmp.eq.s32.totalorder %s18, 1
    %p109 = scmp.ne.s32.totalorder %s104, %s106
    %p110 = scmp.eq.s32.totalorder %s18, 0
    %p111 = por %p109, %p110
    %p112 = scmp.ne.s32.totalorder %s104, %s106
    %p113 = scmp.eq.s32.totalorder %s23, 1
    %p114 = por %p112, %p113
    %p115 = scmp.ne.s32.totalorder %s106, %s107
    %p116 = scmp.eq.s32.totalorder %s23, 0
    %p117 = por %p115, %p116
    %p118 = scmp.ne.s32.totalorder %s106, %s107
    %p119 = scmp.eq.s32.totalorder %s24, 1
    %p120 = por %p118, %p119
    %p122 = scmp.ne.s32.totalorder %s107, %s121
    %p123 = scmp.eq.s32.totalorder %s24, 0
    %p124 = por %p122, %p123
    %s126 = sadd.s32 %s125, 1
    %p129 = scmp.eq.s32.totalorder %s18, 1
    %p130 = scmp.ne.s32.totalorder %s125, %s127
    %p131 = scmp.eq.s32.totalorder %s18, 0
    %p132 = por %p130, %p131
    %p133 = scmp.ne.s32.totalorder %s125, %s127
    %p134 = scmp.eq.s32.totalorder %s23, 1
    %p135 = por %p133, %p134
    %p136 = scmp.ne.s32.totalorder %s127, %s128
    %p137 = scmp.eq.s32.totalorder %s23, 0
    %p138 = por %p136, %p137
    %p139 = scmp.ne.s32.totalorder %s127, %s128
    %p140 = scmp.eq.s32.totalorder %s24, 1
    %p141 = por %p139, %p140
    %p143 = scmp.ne.s32.totalorder %s128, %s142
    %p144 = scmp.eq.s32.totalorder %s24, 0
    %p145 = por %p143, %p144
    %s147 = sadd.s32 %s146, 1
    %p150 = scmp.eq.s32.totalorder %s18, 1
    %p151 = scmp.ne.s32.totalorder %s146, %s148
    %p152 = scmp.eq.s32.totalorder %s18, 0
    %p153 = por %p151, %p152
    %p154 = scmp.ne.s32.totalorder %s146, %s148
    %p155 = scmp.eq.s32.totalorder %s23, 1
    %p156 = por %p154, %p155
    %p157 = scmp.ne.s32.totalorder %s148, %s149
    %p158 = scmp.eq.s32.totalorder %s23, 0
    %p159 = por %p157, %p158
    %p160 = scmp.ne.s32.totalorder %s148, %s149
    %p161 = scmp.eq.s32.totalorder %s24, 1
    %p162 = por %p160, %p161
    %p164 = scmp.ne.s32.totalorder %s149, %s163
    %p165 = scmp.eq.s32.totalorder %s24, 0
    %p166 = por %p164, %p165
    %s168 = sadd.s32 %s167, 1
    %p171 = scmp.eq.s32.totalorder %s18, 1
    %p172 = scmp.ne.s32.totalorder %s167, %s169
    %p173 = scmp.eq.s32.totalorder %s18, 0
    %p174 = por %p172, %p173
    %p175 = scmp.ne.s32.totalorder %s167, %s169
    %p176 = scmp.eq.s32.totalorder %s23, 1
    %p177 = por %p175, %p176
    %p178 = scmp.ne.s32.totalorder %s169, %s170
    %p179 = scmp.eq.s32.totalorder %s23, 0
    %p180 = por %p178, %p179
    %p181 = scmp.ne.s32.totalorder %s169, %s170
    %p182 = scmp.eq.s32.totalorder %s24, 1
    %p183 = por %p181, %p182
    %p185 = scmp.ne.s32.totalorder %s170, %s184
    %p186 = scmp.eq.s32.totalorder %s24, 0
    %p187 = por %p185, %p186
    %s189 = sadd.s32 %s188, 1
    %p192 = scmp.eq.s32.totalorder %s18, 1
    %p193 = scmp.ne.s32.totalorder %s188, %s190
    %p194 = scmp.eq.s32.totalorder %s18, 0
    %p195 = por %p193, %p194
    %p196 = scmp.ne.s32.totalorder %s188, %s190
    %p197 = scmp.eq.s32.totalorder %s23, 1
    %p198 = por %p196, %p197
    %p199 = scmp.ne.s32.totalorder %s190, %s191
    %p200 = scmp.eq.s32.totalorder %s23, 0
    %p201 = por %p199, %p200
    %p202 = scmp.ne.s32.totalorder %s190, %s191
    %p203 = scmp.eq.s32.totalorder %s24, 1
    %p204 = por %p202, %p203
    %p206 = scmp.ne.s32.totalorder %s191, %s205
    %p207 = scmp.eq.s32.totalorder %s24, 0
    %p208 = por %p206, %p207
    %s210 = sadd.s32 %s209, 1
    %p213 = scmp.eq.s32.totalorder %s18, 1
    %p214 = scmp.ne.s32.totalorder %s209, %s211
    %p215 = scmp.eq.s32.totalorder %s18, 0
    %p216 = por %p214, %p215
    %p217 = scmp.ne.s32.totalorder %s209, %s211
    %p218 = scmp.eq.s32.totalorder %s23, 1
    %p219 = por %p217, %p218
    %p220 = scmp.ne.s32.totalorder %s211, %s212
    %p221 = scmp.eq.s32.totalorder %s23, 0
    %p222 = por %p220, %p221
    %p223 = scmp.ne.s32.totalorder %s211, %s212
    %p224 = scmp.eq.s32.totalorder %s24, 1
    %p225 = por %p223, %p224
    %p227 = scmp.ne.s32.totalorder %s212, %s226
    %p228 = scmp.eq.s32.totalorder %s24, 0
    %p229 = por %p227, %p228
    %s230 = ssub.s32 %s18, %s25
    %p231 = scmp.eq.s32.totalorder %s230, 0
    %s233 = sadd.s32 %s232, 1
    %s234 = scalar_select %p231, %s232, %s233
    %p237 = pneg %p231
    %p238 = scmp.eq.s32.totalorder %s18, 1
    %p239 = por %p237, %p238
    %p240 = scmp.ne.s32.totalorder %s232, %s235
    %p241 = scmp.eq.s32.totalorder %s18, 0
    %p242 = por %p240, %p241
    %p243 = scmp.ne.s32.totalorder %s232, %s235
    %p244 = scmp.eq.s32.totalorder %s23, 1
    %p245 = por %p243, %p244
    %p246 = scmp.ne.s32.totalorder %s235, %s236
    %p247 = scmp.eq.s32.totalorder %s23, 0
    %p248 = por %p246, %p247
    %p249 = scmp.ne.s32.totalorder %s235, %s236
    %p250 = scmp.eq.s32.totalorder %s24, 1
    %p251 = por %p249, %p250
    %p253 = scmp.ne.s32.totalorder %s236, %s252
    %p254 = scmp.eq.s32.totalorder %s24, 0
    %p255 = por %p253, %p254
    %s256 = ssub.s32 %s18, %s25
    %p257 = scmp.eq.s32.totalorder %s256, 0
    %s259 = sadd.s32 %s258, 1
    %s260 = scalar_select %p257, %s258, %s259
    %p263 = pneg %p257
    %p264 = scmp.eq.s32.totalorder %s18, 1
    %p265 = por %p263, %p264
    %p266 = scmp.ne.s32.totalorder %s258, %s261
    %p267 = scmp.eq.s32.totalorder %s18, 0
    %p268 = por %p266, %p267
    %p269 = scmp.ne.s32.totalorder %s258, %s261
    %p270 = scmp.eq.s32.totalorder %s23, 1
    %p271 = por %p269, %p270
    %p272 = scmp.ne.s32.totalorder %s261, %s262
    %p273 = scmp.eq.s32.totalorder %s23, 0
    %p274 = por %p272, %p273
    %p275 = scmp.ne.s32.totalorder %s261, %s262
    %p276 = scmp.eq.s32.totalorder %s24, 1
    %p277 = por %p275, %p276
    %p279 = scmp.ne.s32.totalorder %s262, %s278
    %p280 = scmp.eq.s32.totalorder %s24, 0
    %p281 = por %p279, %p280
    %s282 = ssub.s32 %s18, %s25
    %p283 = scmp.eq.s32.totalorder %s282, 0
    %s285 = sadd.s32 %s284, 1
    %s286 = scalar_select %p283, %s284, %s285
    %p289 = pneg %p283
    %p290 = scmp.eq.s32.totalorder %s18, 1
    %p291 = por %p289, %p290
    %p292 = scmp.ne.s32.totalorder %s284, %s287
    %p293 = scmp.eq.s32.totalorder %s18, 0
    %p294 = por %p292, %p293
    %p295 = scmp.ne.s32.totalorder %s284, %s287
    %p296 = scmp.eq.s32.totalorder %s23, 1
    %p297 = por %p295, %p296
    %p298 = scmp.ne.s32.totalorder %s287, %s288
    %p299 = scmp.eq.s32.totalorder %s23, 0
    %p300 = por %p298, %p299
    %p301 = scmp.ne.s32.totalorder %s287, %s288
    %p302 = scmp.eq.s32.totalorder %s24, 1
    %p303 = por %p301, %p302
    %p305 = scmp.ne.s32.totalorder %s288, %s304
    %p306 = scmp.eq.s32.totalorder %s24, 0
    %p307 = por %p305, %p306
    %p308 = scmp.le.s32.totalorder 1, %s18
    %p309 = scmp.lt.s32.totalorder %s18, 3
    %p310 = pnand %p308, %p309
    %p311 = pneg %p310
    // Predicated region
    $region9: #{tpu_custom_call.1} parent=5 // pred_check
      _
    $region10: #{tpu_custom_call.1} parent=5 // pred_check_branch
      %313 = sbr.rel (%p310) target = $region12
    $region11: #{tpu_custom_call.1} parent=5 // pred_region
      %s314 = ssub.s32 %s18, 1
      // Predicated region
      $region13: #{tpu_custom_call.1} parent=11 // pred_check
        %p315 = pneg %p117
      $region14: #{tpu_custom_call.1} parent=11 // pred_check_branch
        %317 = sbr.rel (%p315) target = $region16
      $region15: #{tpu_custom_call.1} parent=11 // pred_region
        _
      $region16: #{tpu_custom_call.1} parent=11 // pred_fallthru
        _
      // Predicated region
      $region17: #{tpu_custom_call.1} parent=11 // pred_check
        %p318 = pneg %p138
      $region18: #{tpu_custom_call.1} parent=11 // pred_check_branch
        %320 = sbr.rel (%p318) target = $region20
      $region19: #{tpu_custom_call.1} parent=11 // pred_region
        _
      $region20: #{tpu_custom_call.1} parent=11 // pred_fallthru
        _
      // Predicated region
      $region21: #{tpu_custom_call.1} parent=11 // pred_check
        %p321 = pneg %p159
      $region22: #{tpu_custom_call.1} parent=11 // pred_check_branch
        %323 = sbr.rel (%p321) target = $region24
      $region23: #{tpu_custom_call.1} parent=11 // pred_region
        _
      $region24: #{tpu_custom_call.1} parent=11 // pred_fallthru
        _
      // Predicated region
      $region25: #{tpu_custom_call.1} parent=11 // pred_check
        %p324 = pneg %p180
      $region26: #{tpu_custom_call.1} parent=11 // pred_check_branch
        %326 = sbr.rel (%p324) target = $region28
      $region27: #{tpu_custom_call.1} parent=11 // pred_region
        _
      $region28: #{tpu_custom_call.1} parent=11 // pred_fallthru
        _
      // Predicated region
      $region29: #{tpu_custom_call.1} parent=11 // pred_check
        %p327 = pneg %p201
      $region30: #{tpu_custom_call.1} parent=11 // pred_check_branch
        %329 = sbr.rel (%p327) target = $region32
      $region31: #{tpu_custom_call.1} parent=11 // pred_region
        _
      $region32: #{tpu_custom_call.1} parent=11 // pred_fallthru
        _
      // Predicated region
      $region33: #{tpu_custom_call.1} parent=11 // pred_check
        %p330 = pneg %p222
      $region34: #{tpu_custom_call.1} parent=11 // pred_check_branch
        %332 = sbr.rel (%p330) target = $region36
      $region35: #{tpu_custom_call.1} parent=11 // pred_region
        _
      $region36: #{tpu_custom_call.1} parent=11 // pred_fallthru
        _
    $region12: #{tpu_custom_call.1} parent=5 // pred_fallthru
      _
    %p333 = scmp.lt.s32.totalorder %s18, 2
    // Predicated region
    $region37: #{tpu_custom_call.1} parent=5 // pred_check
      %p334 = pneg %p333
    $region38: #{tpu_custom_call.1} parent=5 // pred_check_branch
      %336 = sbr.rel (%p334) target = $region40
    $region39: #{tpu_custom_call.1} parent=5 // pred_region
      // Predicated region
      $region41: #{tpu_custom_call.1} parent=39 // pred_check
        %p337 = pneg %p38
      $region42: #{tpu_custom_call.1} parent=39 // pred_check_branch
        %339 = sbr.rel (%p337) target = $region44
      $region43: #{tpu_custom_call.1} parent=39 // pred_region
        %s340 = smul.u32 4, %s18
        %p341 = scmp.lt.s32.totalorder %s340, 7
        %s342 = scalar_select %p341, %s340, 7
        %s343 = smul.addr %s342, 4
        %s344 = scalar_lea.vmem %s0, %s343
        %s345 = smul.u32 4, %s18
      $region44: #{tpu_custom_call.1} parent=39 // pred_fallthru
        _
      // Predicated region
      $region45: #{tpu_custom_call.1} parent=39 // pred_check
        %p346 = pneg %p64
      $region46: #{tpu_custom_call.1} parent=39 // pred_check_branch
        %348 = sbr.rel (%p346) target = $region48
      $region47: #{tpu_custom_call.1} parent=39 // pred_region
        %s349 = smul.u32 4, %s18
        %p350 = scmp.lt.s32.totalorder %s349, 7
        %s351 = scalar_select %p350, %s349, 7
        %s352 = smul.addr %s351, 4
        %s353 = scalar_lea.vmem %s1, %s352
        %s354 = smul.u32 4, %s18
      $region48: #{tpu_custom_call.1} parent=39 // pred_fallthru
        _
      // Predicated region
      $region49: #{tpu_custom_call.1} parent=39 // pred_check
        %p355 = pneg %p90
      $region50: #{tpu_custom_call.1} parent=39 // pred_check_branch
        %357 = sbr.rel (%p355) target = $region52
      $region51: #{tpu_custom_call.1} parent=39 // pred_region
        %s358 = smul.u32 4, %s18
        %p359 = scmp.lt.s32.totalorder %s358, 7
        %s360 = scalar_select %p359, %s358, 7
        %s361 = smul.addr %s360, 4
        %s362 = scalar_lea.vmem %s2, %s361
        %s363 = smul.u32 4, %s18
      $region52: #{tpu_custom_call.1} parent=39 // pred_fallthru
        _
    $region40: #{tpu_custom_call.1} parent=5 // pred_fallthru
      _
    %p364 = scmp.le.s32.totalorder 1, %s18
    %p365 = scmp.lt.s32.totalorder %s18, 3
    %p366 = pnand %p364, %p365
    %p367 = pneg %p366
    // Predicated region
    $region53: #{tpu_custom_call.1} parent=5 // pred_check
      _
    $region54: #{tpu_custom_call.1} parent=5 // pred_check_branch
      %369 = sbr.rel (%p366) target = $region56
    $region55: #{tpu_custom_call.1} parent=5 // pred_region
      %s370 = ssub.s32 %s18, 1
      %s371 = smul.u32 4, %s23
      %p372 = scmp.lt.s32.totalorder %s371, 7
      %s373 = scalar_select %p372, %s371, 7
      %s374 = smul.addr %s373, 4
      %s375 = scalar_lea.vmem %s0, %s374
      %p376 = pneg %p44
      %p377 = pneg %p41
      %s378 = smul.u32 4, %s23
      %p379 = scmp.lt.s32.totalorder %s378, 7
      %s380 = scalar_select %p379, %s378, 7
      %s381 = smul.addr %s380, 4
      %s382 = scalar_lea.vmem %s1, %s381
      %p383 = pneg %p70
      %p384 = pneg %p67
      %s385 = smul.u32 4, %s23
      %p386 = scmp.lt.s32.totalorder %s385, 7
      %s387 = scalar_select %p386, %s385, 7
      %s388 = smul.addr %s387, 4
      %s389 = scalar_lea.vmem %s2, %s388
      %p390 = pneg %p96
      %p391 = pneg %p93
      %p392 = pneg %p117
      %p393 = pneg %p114
      %p394 = pneg %p138
      %p395 = pneg %p135
      %p396 = pneg %p159
      %p397 = pneg %p156
      %p398 = pneg %p180
      %p399 = pneg %p177
      %p400 = pneg %p201
      %p401 = pneg %p198
      %p402 = pneg %p222
      %p403 = pneg %p219
      %p404 = pneg %p248
      %p405 = pneg %p245
      %s406 = smul.u32 4, %s23
      %p407 = scmp.lt.s32.totalorder %s406, 7
      %s408 = scalar_select %p407, %s406, 7
      %s409 = smul.addr %s408, 4
      %s410 = scalar_lea.vmem %s9, %s409
      %p411 = pneg %p274
      %p412 = pneg %p271
      %s413 = smul.u32 4, %s23
      %p414 = scmp.lt.s32.totalorder %s413, 7
      %s415 = scalar_select %p414, %s413, 7
      %s416 = smul.addr %s415, 4
      %s417 = scalar_lea.vmem %s10, %s416
      %p418 = pneg %p300
      %p419 = pneg %p297
      %s420 = smul.u32 4, %s23
      %p421 = scmp.lt.s32.totalorder %s420, 7
      %s422 = scalar_select %p421, %s420, 7
      %s423 = smul.addr %s422, 4
      %s424 = scalar_lea.vmem %s11, %s423
      %s425 = smul.u32 4, %s23
      %p426 = scmp.lt.s32.totalorder %s425, 7
      %s427 = scalar_select %p426, %s425, 7
      %s428 = smul.addr %s427, 4
      %s429 = scalar_lea.vmem %s0, %s428
      %s430 = smul.u32 4, %s23
      %s431 = smul.u32 4, %s23
      %p432 = scmp.lt.s32.totalorder %s431, 7
      %s433 = scalar_select %p432, %s431, 7
      %s434 = smul.addr %s433, 4
      %s435 = scalar_lea.vmem %s1, %s434
      %s436 = smul.u32 4, %s23
      %s437 = smul.u32 4, %s23
      %p438 = scmp.lt.s32.totalorder %s437, 7
      %s439 = scalar_select %p438, %s437, 7
      %s440 = smul.addr %s439, 4
      %s441 = scalar_lea.vmem %s2, %s440
      %s442 = smul.u32 4, %s23
      %s443 = smul.u32 4, %s23
      %p444 = scmp.lt.s32.totalorder %s443, 7
      %s445 = scalar_select %p444, %s443, 7
      %s446 = smul.addr %s445, 4
      %s447 = scalar_lea.vmem %s9, %s446
      %s448 = smul.u32 4, %s23
      %s449 = smul.u32 4, %s23
      %p450 = scmp.lt.s32.totalorder %s449, 7
      %s451 = scalar_select %p450, %s449, 7
      %s452 = smul.addr %s451, 4
      %s453 = scalar_lea.vmem %s10, %s452
      %s454 = smul.u32 4, %s23
      %s455 = smul.u32 4, %s23
      %p456 = scmp.lt.s32.totalorder %s455, 7
      %s457 = scalar_select %p456, %s455, 7
      %s458 = smul.addr %s457, 4
      %s459 = scalar_lea.vmem %s11, %s458
      %s460 = smul.u32 4, %s23
      %v462 = vld [vmem:[%s429] sm:$0xf]
      %v463 = vld [vmem:[%s429 + $0x4] sm:$0xf]
      %v464 = vld [vmem:[%s429 + $0x8] sm:$0xf]
      %v465 = vld [vmem:[%s429 + $0xc] sm:$0xf]
      %v466 = vld [vmem:[%s3] sm:$0xf]
      %v467 = vld [vmem:[%s3 + $0x4] sm:$0xf]
      %v468 = vld [vmem:[%s3 + $0x8] sm:$0xf]
      %v469 = vld [vmem:[%s3 + $0xc] sm:$0xf]
      %v470 = vld [vmem:[%s3 + $0x10] sm:$0xf]
      %v471 = vld [vmem:[%s3 + $0x14] sm:$0xf]
      %v472 = vld [vmem:[%s3 + $0x18] sm:$0xf]
      %v473 = vld [vmem:[%s3 + $0x1c] sm:$0xf]
      %v474 = vld [vmem:[%s3 + $0x20] sm:$0xf]
      %v475 = vld [vmem:[%s3 + $0x24] sm:$0xf]
      %v476 = vld [vmem:[%s3 + $0x28] sm:$0xf]
      %v477 = vld [vmem:[%s3 + $0x2c] sm:$0xf]
      %v478 = vld [vmem:[%s3 + $0x30] sm:$0xf]
      %v479 = vld [vmem:[%s3 + $0x34] sm:$0xf]
      %v480 = vld [vmem:[%s3 + $0x38] sm:$0xf]
      %v481 = vld [vmem:[%s3 + $0x3c] sm:$0xf]
      %v482 = vld [vmem:[%s6] sm:$0x1]
      %v484 = vlaneseq
      %v485 = vshrl.u32 %v484, 7
      %v486 = vsub.s32 0, %v485
      %v487 = vrot.slane %v482, %v486
      %v493 = vunpack.c.l.b16 %v462
      %v494 = vunpack.c.l.b16 %v463
      %v495 = vunpack.c.l.b16 %v464
      %v496 = vunpack.c.l.b16 %v465
      %v497 = vpack.c.b16 %v494, %v493
      %v498 = vpack.c.b16 %v496, %v495
      %v517 = vunpack.c.l.b16 %v466
      %v518 = vunpack.c.l.b16 %v467
      %v519 = vunpack.c.l.b16 %v468
      %v520 = vunpack.c.l.b16 %v469
      %v521 = vunpack.c.l.b16 %v470
      %v522 = vunpack.c.l.b16 %v471
      %v523 = vunpack.c.l.b16 %v472
      %v524 = vunpack.c.l.b16 %v473
      %v525 = vunpack.c.l.b16 %v474
      %v526 = vunpack.c.l.b16 %v475
      %v527 = vunpack.c.l.b16 %v476
      %v528 = vunpack.c.l.b16 %v477
      %v529 = vunpack.c.l.b16 %v478
      %v530 = vunpack.c.l.b16 %v479
      %v531 = vunpack.c.l.b16 %v480
      %v532 = vunpack.c.l.b16 %v481
      %v533 = vpack.c.b16 %v518, %v517
      %v534 = vpack.c.b16 %v520, %v519
      %v535 = vpack.c.b16 %v522, %v521
      %v536 = vpack.c.b16 %v524, %v523
      %v537 = vpack.c.b16 %v526, %v525
      %v538 = vpack.c.b16 %v528, %v527
      %v539 = vpack.c.b16 %v530, %v529
      %v540 = vpack.c.b16 %v532, %v531
      %549 = vmatprep.subr.bf16.mxu0 0
      %550 = vmatpush1.bf16.msra.mxu0 %v533
      %551 = vmatprep.subr.bf16.mxu0 0
      %552 = vmatpush1.bf16.msra.mxu0 %v534
      %553 = vmatprep.subr.bf16.mxu0 0
      %554 = vmatpush1.bf16.msra.mxu0 %v535
      %555 = vmatprep.subr.bf16.mxu0 0
      %556 = vmatpush1.bf16.msra.mxu0 %v536
      %557 = vmatprep.subr.bf16.mxu0 0
      %558 = vmatpush1.bf16.msra.mxu0 %v537
      %559 = vmatprep.subr.bf16.mxu0 0
      %560 = vmatpush1.bf16.msra.mxu0 %v538
      %561 = vmatprep.subr.bf16.mxu0 0
      %562 = vmatpush1.bf16.msra.mxu0 %v539
      %563 = vmatprep.subr.bf16.mxu0 0
      %564 = vmatpush1.bf16.msra.mxu0 %v540
      %565 = vmatprep.subr.bf16.mxu0 0
      %566 = vmatpush1.bf16.msra.mxu0 0
      %567 = vmatprep.subr.bf16.mxu0 0
      %568 = vmatpush1.bf16.msra.mxu0 0
      %569 = vmatprep.subr.bf16.mxu0 0
      %570 = vmatpush1.bf16.msra.mxu0 0
      %571 = vmatprep.subr.bf16.mxu0 0
      %572 = vmatpush1.bf16.msra.mxu0 0
      %573 = vmatprep.subr.bf16.mxu0 0
      %574 = vmatpush1.bf16.msra.mxu0 0
      %575 = vmatprep.subr.bf16.mxu0 0
      %576 = vmatpush1.bf16.msra.mxu0 0
      %577 = vmatprep.subr.bf16.mxu0 0
      %578 = vmatpush1.bf16.msra.mxu0 0
      %579 = vmatprep.subr.bf16.mxu0 0
      %580 = vmatpush1.bf16.msra.mxu0 0
      %581 = vmatprep.mubr.bf16.mxu0 0
      %582 = vmatmul.mubr.bf16.gmra.mrb[0].mxu0 %v497
      %v583 = vpop.f32.mrb[0].mxu0
      %v584 = vadd.f32 %v487, %v583
      %v585 = vpop.f32.mrb[0].mxu0
      %v586 = vpop.f32.mrb[0].mxu0
      %v587 = vadd.f32 %v487, %v586
      %v588 = vpop.f32.mrb[0].mxu0
      %589 = vmatprep.mubr.bf16.mxu0 0
      %590 = vmatmul.mubr.bf16.gmra.mrb[0].mxu0 %v498
      %v591 = vpop.f32.mrb[0].mxu0
      %v592 = vadd.f32 %v487, %v591
      %v593 = vpop.f32.mrb[0].mxu0
      %v594 = vpop.f32.mrb[0].mxu0
      %v595 = vadd.f32 %v487, %v594
      %v596 = vpop.f32.mrb[0].mxu0
      %597 = vdwg.mxu0
      %v598 = vld [vmem:[%s435] sm:$0xf]
      %v599 = vld [vmem:[%s435 + $0x4] sm:$0xf]
      %v600 = vld [vmem:[%s435 + $0x8] sm:$0xf]
      %v601 = vld [vmem:[%s435 + $0xc] sm:$0xf]
      %v602 = vld [vmem:[%s4] sm:$0xf]
      %v603 = vld [vmem:[%s4 + $0x4] sm:$0xf]
      %v604 = vld [vmem:[%s4 + $0x8] sm:$0xf]
      %v605 = vld [vmem:[%s4 + $0xc] sm:$0xf]
      %v606 = vld [vmem:[%s4 + $0x10] sm:$0xf]
      %v607 = vld [vmem:[%s4 + $0x14] sm:$0xf]
      %v608 = vld [vmem:[%s4 + $0x18] sm:$0xf]
      %v609 = vld [vmem:[%s4 + $0x1c] sm:$0xf]
      %v610 = vld [vmem:[%s4 + $0x20] sm:$0xf]
      %v611 = vld [vmem:[%s4 + $0x24] sm:$0xf]
      %v612 = vld [vmem:[%s4 + $0x28] sm:$0xf]
      %v613 = vld [vmem:[%s4 + $0x2c] sm:$0xf]
      %v614 = vld [vmem:[%s4 + $0x30] sm:$0xf]
      %v615 = vld [vmem:[%s4 + $0x34] sm:$0xf]
      %v616 = vld [vmem:[%s4 + $0x38] sm:$0xf]
      %v617 = vld [vmem:[%s4 + $0x3c] sm:$0xf]
      %v618 = vld [vmem:[%s7] sm:$0x1]
      %v620 = vlaneseq
      %v621 = vshrl.u32 %v620, 7
      %v622 = vsub.s32 0, %v621
      %v623 = vrot.slane %v618, %v622
      %v629 = vunpack.c.l.b16 %v598
      %v630 = vunpack.c.l.b16 %v599
      %v631 = vunpack.c.l.b16 %v600
      %v632 = vunpack.c.l.b16 %v601
      %v633 = vpack.c.b16 %v630, %v629
      %v634 = vpack.c.b16 %v632, %v631
      %v653 = vunpack.c.l.b16 %v602
      %v654 = vunpack.c.l.b16 %v603
      %v655 = vunpack.c.l.b16 %v604
      %v656 = vunpack.c.l.b16 %v605
      %v657 = vunpack.c.l.b16 %v606
      %v658 = vunpack.c.l.b16 %v607
      %v659 = vunpack.c.l.b16 %v608
      %v660 = vunpack.c.l.b16 %v609
      %v661 = vunpack.c.l.b16 %v610
      %v662 = vunpack.c.l.b16 %v611
      %v663 = vunpack.c.l.b16 %v612
      %v664 = vunpack.c.l.b16 %v613
      %v665 = vunpack.c.l.b16 %v614
      %v666 = vunpack.c.l.b16 %v615
      %v667 = vunpack.c.l.b16 %v616
      %v668 = vunpack.c.l.b16 %v617
      %v669 = vpack.c.b16 %v654, %v653
      %v670 = vpack.c.b16 %v656, %v655
      %v671 = vpack.c.b16 %v658, %v657
      %v672 = vpack.c.b16 %v660, %v659
      %v673 = vpack.c.b16 %v662, %v661
      %v674 = vpack.c.b16 %v664, %v663
      %v675 = vpack.c.b16 %v666, %v665
      %v676 = vpack.c.b16 %v668, %v667
      %685 = vmatprep.subr.bf16.mxu0 0
      %686 = vmatpush1.bf16.msra.mxu0 %v669
      %687 = vmatprep.subr.bf16.mxu0 0
      %688 = vmatpush1.bf16.msra.mxu0 %v670
      %689 = vmatprep.subr.bf16.mxu0 0
      %690 = vmatpush1.bf16.msra.mxu0 %v671
      %691 = vmatprep.subr.bf16.mxu0 0
      %692 = vmatpush1.bf16.msra.mxu0 %v672
      %693 = vmatprep.subr.bf16.mxu0 0
      %694 = vmatpush1.bf16.msra.mxu0 %v673
      %695 = vmatprep.subr.bf16.mxu0 0
      %696 = vmatpush1.bf16.msra.mxu0 %v674
      %697 = vmatprep.subr.bf16.mxu0 0
      %698 = vmatpush1.bf16.msra.mxu0 %v675
      %699 = vmatprep.subr.bf16.mxu0 0
      %700 = vmatpush1.bf16.msra.mxu0 %v676
      %701 = vmatprep.subr.bf16.mxu0 0
      %702 = vmatpush1.bf16.msra.mxu0 0
      %703 = vmatprep.subr.bf16.mxu0 0
      %704 = vmatpush1.bf16.msra.mxu0 0
      %705 = vmatprep.subr.bf16.mxu0 0
      %706 = vmatpush1.bf16.msra.mxu0 0
      %707 = vmatprep.subr.bf16.mxu0 0
      %708 = vmatpush1.bf16.msra.mxu0 0
      %709 = vmatprep.subr.bf16.mxu0 0
      %710 = vmatpush1.bf16.msra.mxu0 0
      %711 = vmatprep.subr.bf16.mxu0 0
      %712 = vmatpush1.bf16.msra.mxu0 0
      %713 = vmatprep.subr.bf16.mxu0 0
      %714 = vmatpush1.bf16.msra.mxu0 0
      %715 = vmatprep.subr.bf16.mxu0 0
      %716 = vmatpush1.bf16.msra.mxu0 0
      %717 = vmatprep.mubr.bf16.mxu0 0
      %718 = vmatmul.mubr.bf16.gmra.mrb[0].mxu0 %v633
      %v719 = vpop.f32.mrb[0].mxu0
      %v720 = vadd.f32 %v623, %v719
      %v721 = vpop.f32.mrb[0].mxu0
      %v722 = vpop.f32.mrb[0].mxu0
      %v723 = vadd.f32 %v623, %v722
      %v724 = vpop.f32.mrb[0].mxu0
      %725 = vmatprep.mubr.bf16.mxu0 0
      %726 = vmatmul.mubr.bf16.gmra.mrb[0].mxu0 %v634
      %v727 = vpop.f32.mrb[0].mxu0
      %v728 = vadd.f32 %v623, %v727
      %v729 = vpop.f32.mrb[0].mxu0
      %v730 = vpop.f32.mrb[0].mxu0
      %v731 = vadd.f32 %v623, %v730
      %v732 = vpop.f32.mrb[0].mxu0
      %733 = vdwg.mxu0
      %v734 = vld [vmem:[%s441] sm:$0xf]
      %v735 = vld [vmem:[%s441 + $0x4] sm:$0xf]
      %v736 = vld [vmem:[%s441 + $0x8] sm:$0xf]
      %v737 = vld [vmem:[%s441 + $0xc] sm:$0xf]
      %v738 = vld [vmem:[%s5] sm:$0xf]
      %v739 = vld [vmem:[%s5 + $0x4] sm:$0xf]
      %v740 = vld [vmem:[%s5 + $0x8] sm:$0xf]
      %v741 = vld [vmem:[%s5 + $0xc] sm:$0xf]
      %v742 = vld [vmem:[%s8] sm:$0x1]
      %v744 = vlaneseq
      %v745 = vshrl.u32 %v744, 7
      %v746 = vsub.s32 0, %v745
      %v747 = vrot.slane %v742, %v746
      %v753 = vunpack.c.l.b16 %v734
      %v754 = vunpack.c.l.b16 %v735
      %v755 = vunpack.c.l.b16 %v736
      %v756 = vunpack.c.l.b16 %v737
      %v757 = vpack.c.b16 %v754, %v753
      %v758 = vpack.c.b16 %v756, %v755
      %v763 = vunpack.c.l.b16 %v738
      %v764 = vunpack.c.l.b16 %v739
      %v765 = vunpack.c.l.b16 %v740
      %v766 = vunpack.c.l.b16 %v741
      %v767 = vpack.c.b16 %v764, %v763
      %v768 = vpack.c.b16 %v766, %v765
      %vm771 = vcmask 261120
      %v773 = vsel %vm771, %v757, 0
      %v776 = vsel %vm771, %v758, 0
      %778 = vmatprep.subr.bf16.mxu0 0
      %779 = vmatpush1.bf16.msra.mxu0 %v767
      %780 = vmatprep.subr.bf16.mxu0 0
      %781 = vmatpush1.bf16.msra.mxu0 %v768
      %782 = vmatprep.subr.bf16.mxu0 0
      %783 = vmatpush1.bf16.msra.mxu0 0
      %784 = vmatprep.subr.bf16.mxu0 0
      %785 = vmatpush1.bf16.msra.mxu0 0
      %786 = vmatprep.subr.bf16.mxu0 0
      %787 = vmatpush1.bf16.msra.mxu0 0
      %788 = vmatprep.subr.bf16.mxu0 0
      %789 = vmatpush1.bf16.msra.mxu0 0
      %790 = vmatprep.subr.bf16.mxu0 0
      %791 = vmatpush1.bf16.msra.mxu0 0
      %792 = vmatprep.subr.bf16.mxu0 0
      %793 = vmatpush1.bf16.msra.mxu0 0
      %794 = vmatprep.subr.bf16.mxu0 0
      %795 = vmatpush1.bf16.msra.mxu0 0
      %796 = vmatprep.subr.bf16.mxu0 0
      %797 = vmatpush1.bf16.msra.mxu0 0
      %798 = vmatprep.subr.bf16.mxu0 0
      %799 = vmatpush1.bf16.msra.mxu0 0
      %800 = vmatprep.subr.bf16.mxu0 0
      %801 = vmatpush1.bf16.msra.mxu0 0
      %802 = vmatprep.subr.bf16.mxu0 0
      %803 = vmatpush1.bf16.msra.mxu0 0
      %804 = vmatprep.subr.bf16.mxu0 0
      %805 = vmatpush1.bf16.msra.mxu0 0
      %806 = vmatprep.subr.bf16.mxu0 0
      %807 = vmatpush1.bf16.msra.mxu0 0
      %808 = vmatprep.subr.bf16.mxu0 0
      %809 = vmatpush1.bf16.msra.mxu0 0
      %810 = vmatprep.mubr.bf16.mxu0 0
      %811 = vmatmul.mubr.bf16.gmra.mrb[0].mxu0 %v773
      %v812 = vpop.f32.mrb[0].mxu0
      %v813 = vadd.f32 %v747, %v812
      %v814 = vpop.f32.mrb[0].mxu0
      %v815 = vpop.f32.mrb[0].mxu0
      %v816 = vadd.f32 %v747, %v815
      %v817 = vpop.f32.mrb[0].mxu0
      %818 = vmatprep.mubr.bf16.mxu0 0
      %819 = vmatmul.mubr.bf16.gmra.mrb[0].mxu0 %v776
      %v820 = vpop.f32.mrb[0].mxu0
      %v821 = vadd.f32 %v747, %v820
      %v822 = vpop.f32.mrb[0].mxu0
      %v823 = vpop.f32.mrb[0].mxu0
      %v824 = vadd.f32 %v747, %v823
      %v825 = vpop.f32.mrb[0].mxu0
      %826 = vdwg.mxu0
      %v827 = vpack.c.bf16 %v587, %v584
      %v828 = vpack.c.bf16 %v595, %v592
      %v831 = vunpack.c.l.b16 %v827
      %v832 = vunpack.c.h.b16 %v827
      %v833 = vunpack.c.l.b16 %v828
      %v834 = vunpack.c.h.b16 %v828
      %v835 = vpack.c.b16 %v831, %v831
      %v836 = vpack.c.b16 %v832, %v832
      %v837 = vpack.c.b16 %v833, %v833
      %v838 = vpack.c.b16 %v834, %v834
      %vm843 = vcmask 257024
      %844 = vst.msk [vmem:[%s447] sm:$0xf] %vm843, %v835
      %845 = vst.msk [vmem:[%s447 + $0x4] sm:$0xf] %vm843, %v836
      %846 = vst.msk [vmem:[%s447 + $0x8] sm:$0xf] %vm843, %v837
      %847 = vst.msk [vmem:[%s447 + $0xc] sm:$0xf] %vm843, %v838
      %v848 = vpack.c.bf16 %v723, %v720
      %v849 = vpack.c.bf16 %v731, %v728
      %v852 = vunpack.c.l.b16 %v848
      %v853 = vunpack.c.h.b16 %v848
      %v854 = vunpack.c.l.b16 %v849
      %v855 = vunpack.c.h.b16 %v849
      %v856 = vpack.c.b16 %v852, %v852
      %v857 = vpack.c.b16 %v853, %v853
      %v858 = vpack.c.b16 %v854, %v854
      %v859 = vpack.c.b16 %v855, %v855
      %864 = vst.msk [vmem:[%s453] sm:$0xf] %vm843, %v856
      %865 = vst.msk [vmem:[%s453 + $0x4] sm:$0xf] %vm843, %v857
      %866 = vst.msk [vmem:[%s453 + $0x8] sm:$0xf] %vm843, %v858
      %867 = vst.msk [vmem:[%s453 + $0xc] sm:$0xf] %vm843, %v859
      %v868 = vpack.c.bf16 %v816, %v813
      %v869 = vpack.c.bf16 %v824, %v821
      %v872 = vunpack.c.l.b16 %v868
      %v873 = vunpack.c.h.b16 %v868
      %v874 = vunpack.c.l.b16 %v869
      %v875 = vunpack.c.h.b16 %v869
      %v876 = vpack.c.b16 %v872, %v872
      %v877 = vpack.c.b16 %v873, %v873
      %v878 = vpack.c.b16 %v874, %v874
      %v879 = vpack.c.b16 %v875, %v875
      %884 = vst.msk [vmem:[%s459] sm:$0xf] %vm843, %v876
      %885 = vst.msk [vmem:[%s459 + $0x4] sm:$0xf] %vm843, %v877
      %886 = vst.msk [vmem:[%s459 + $0x8] sm:$0xf] %vm843, %v878
      %887 = vst.msk [vmem:[%s459 + $0xc] sm:$0xf] %vm843, %v879
      %s888 = smul.u32 4, %s23
      %p889 = scmp.lt.s32.totalorder %s888, 7
      %s890 = scalar_select %p889, %s888, 7
      %s891 = smul.addr %s890, 4
      %s892 = scalar_lea.vmem %s9, %s891
      %s893 = smul.u32 4, %s23
      %p894 = scmp.lt.s32.totalorder %s893, 7
      %s895 = scalar_select %p894, %s893, 7
      %s896 = smul.addr %s895, 4
      %s897 = scalar_lea.vmem %s10, %s896
      %s898 = smul.u32 4, %s23
      %p899 = scmp.lt.s32.totalorder %s898, 7
      %s900 = scalar_select %p899, %s898, 7
      %s901 = smul.addr %s900, 4
      %s902 = scalar_lea.vmem %s11, %s901
      // Predicated region
      $region57: #{tpu_custom_call.1} parent=55 // pred_check
        %p903 = pneg %p245
      $region58: #{tpu_custom_call.1} parent=55 // pred_check_branch
        %905 = sbr.rel (%p903) target = $region60
      $region59: #{tpu_custom_call.1} parent=55 // pred_region
        %s906 = smul.u32 4, %s23
      $region60: #{tpu_custom_call.1} parent=55 // pred_fallthru
        _
      // Predicated region
      $region61: #{tpu_custom_call.1} parent=55 // pred_check
        %p907 = pneg %p271
      $region62: #{tpu_custom_call.1} parent=55 // pred_check_branch
        %909 = sbr.rel (%p907) target = $region64
      $region63: #{tpu_custom_call.1} parent=55 // pred_region
        %s910 = smul.u32 4, %s23
      $region64: #{tpu_custom_call.1} parent=55 // pred_fallthru
        _
      // Predicated region
      $region65: #{tpu_custom_call.1} parent=55 // pred_check
        %p911 = pneg %p297
      $region66: #{tpu_custom_call.1} parent=55 // pred_check_branch
        %913 = sbr.rel (%p911) target = $region68
      $region67: #{tpu_custom_call.1} parent=55 // pred_region
        %s914 = smul.u32 4, %s23
      $region68: #{tpu_custom_call.1} parent=55 // pred_fallthru
        _
    $region56: #{tpu_custom_call.1} parent=5 // pred_fallthru
      _
    %p915 = scmp.le.s32.totalorder 2, %s18
    // Predicated region
    $region69: #{tpu_custom_call.1} parent=5 // pred_check
      %p916 = pneg %p915
    $region70: #{tpu_custom_call.1} parent=5 // pred_check_branch
      %918 = sbr.rel (%p916) target = $region72
    $region71: #{tpu_custom_call.1} parent=5 // pred_region
      %s919 = ssub.s32 %s18, 2
      // Predicated region
      $region73: #{tpu_custom_call.1} parent=71 // pred_check
        %p920 = pneg %p251
      $region74: #{tpu_custom_call.1} parent=71 // pred_check_branch
        %922 = sbr.rel (%p920) target = $region76
      $region75: #{tpu_custom_call.1} parent=71 // pred_region
        %s923 = smul.u32 4, %s24
        %p924 = scmp.lt.s32.totalorder %s923, 7
        %s925 = scalar_select %p924, %s923, 7
        %s926 = smul.addr %s925, 4
        %s927 = scalar_lea.vmem %s9, %s926
      $region76: #{tpu_custom_call.1} parent=71 // pred_fallthru
        _
      // Predicated region
      $region77: #{tpu_custom_call.1} parent=71 // pred_check
        %p928 = pneg %p277
      $region78: #{tpu_custom_call.1} parent=71 // pred_check_branch
        %930 = sbr.rel (%p928) target = $region80
      $region79: #{tpu_custom_call.1} parent=71 // pred_region
        %s931 = smul.u32 4, %s24
        %p932 = scmp.lt.s32.totalorder %s931, 7
        %s933 = scalar_select %p932, %s931, 7
        %s934 = smul.addr %s933, 4
        %s935 = scalar_lea.vmem %s10, %s934
      $region80: #{tpu_custom_call.1} parent=71 // pred_fallthru
        _
      // Predicated region
      $region81: #{tpu_custom_call.1} parent=71 // pred_check
        %p936 = pneg %p303
      $region82: #{tpu_custom_call.1} parent=71 // pred_check_branch
        %938 = sbr.rel (%p936) target = $region84
      $region83: #{tpu_custom_call.1} parent=71 // pred_region
        %s939 = smul.u32 4, %s24
        %p940 = scmp.lt.s32.totalorder %s939, 7
        %s941 = scalar_select %p940, %s939, 7
        %s942 = smul.addr %s941, 4
        %s943 = scalar_lea.vmem %s11, %s942
      $region84: #{tpu_custom_call.1} parent=71 // pred_fallthru
        _
    $region72: #{tpu_custom_call.1} parent=5 // pred_fallthru
      _
  $region6: #{tpu_custom_call.1} parent=0 // loop_footer
    %s22 = sadd.s32 1, %s18
  $region7: #{tpu_custom_call.1} parent=0 // loop_footer_branch
    %17 = sbr.rel target = $region3
  $region8: #{tpu_custom_call.1} parent=0 // loop_exit
    _

</llo_original>
